<compile_context>
chip_gen: v6e
topology: v6e:2x2x1
jax: 0.10.0
libtpu: 0.0.40
codegen_flags: <defaults>
</compile_context>

<pallas_src>
import functools

import jax
import jax.numpy as jnp
from jax import lax
from jax.experimental import pallas as pl
from jax.experimental.pallas import tpu as pltpu


def _round_up(x: int, m: int) -> int:
    return ((x + m - 1) // m) * m


def _gelu_exact_f32(x):
    # F.gelu(approximate="none"): 0.5 * x * (1 + erf(x / sqrt(2))), in f32.
    x = x.astype(jnp.float32)
    return 0.5 * x * (1.0 + lax.erf(x * 0.7071067811865476))


def _gelu_tanh(x):
    # tanh approximation; jnp.tanh routes to the EUP slot (cheap VALU-wise).
    c = jnp.asarray(0.7978845608028654, x.dtype)
    k = jnp.asarray(0.044715, x.dtype)
    return 0.5 * x * (1.0 + jnp.tanh(c * (x + k * (x * x * x))))


def _pick_hidden_chunk(hid_p: int, target: int = 1024) -> int:
    # Largest multiple of 128 that divides hid_p and is <= target.
    if hid_p <= target:
        return hid_p
    best = 128
    for c in range(256, target + 1, 128):
        if hid_p % c == 0:
            best = c
    return best


def _vmem_limit_bytes() -> int:
    # Leave headroom for Mosaic internal scratch. v7x: 64 MiB physical VMEM
    # per TC -> ~56 MiB; v5e/v6e: 128 MiB -> cap at 100 MiB.
    try:
        cap = int(pltpu.get_tpu_info().vmem_capacity_bytes)
    except Exception:
        cap = 64 * 1024 * 1024
    return int(min(cap - 8 * 1024 * 1024, 100 * 1024 * 1024))


def _mlp_kernel(x_ref, w_fc_ref, b_fc_ref, w_proj_ref, b_proj_ref, o_ref, *,
                compute_dtype, chunk, n_chunks, gelu_approx):
    # Row tile of activations, cast on-chip (hides under MXU slack).
    x = x_ref[...].astype(compute_dtype)
    acc = jnp.zeros(o_ref.shape, jnp.float32)
    # Hidden-dim chunk loop: keeps the GELU temporary at (TM, chunk) and lets
    # the VPU/EUP work of chunk c overlap the MXU work of chunk c+1.
    for c in range(n_chunks):
        lo = c * chunk
        hi = lo + chunk
        h = jnp.dot(x, w_fc_ref[:, lo:hi], preferred_element_type=jnp.float32)
        h = h + b_fc_ref[:, lo:hi]                   # f32 bias add
        if gelu_approx:
            h = _gelu_tanh(h.astype(compute_dtype))  # EUP tanh path
        else:
            h = _gelu_exact_f32(h).astype(compute_dtype)  # exact erf (PyTorch parity)
        # TODO(synk): training-mode dropout (pltpu.prng_seed + stateful_bernoulli)
        # omitted; eval-mode dropout is the identity.
        acc = acc + jnp.dot(h, w_proj_ref[lo:hi, :],
                            preferred_element_type=jnp.float32)
    o_ref[...] = (acc + b_proj_ref[...]).astype(o_ref.dtype)


def prepare_mlp_params(w_fc, b_fc, w_proj, b_proj, *, compute_dtype=jnp.bfloat16):
    """Cast / lane-pad the MLP weights ONCE (call at model init, not per step).

    w_fc: (n_embd, 4*n_embd), w_proj: (4*n_embd, n_embd)  (nn.Linear transposed).
    """
    compute_dtype = jnp.dtype(compute_dtype)
    ne, hidden = w_fc.shape
    assert w_proj.shape == (hidden, ne)
    ne_p = _round_up(ne, 128)
    hid_p = _round_up(hidden, 128)

    def pad_to(a, rows, cols):
        if a.shape == (rows, cols):
            return a
        return jnp.pad(a, ((0, rows - a.shape[0]), (0, cols - a.shape[1])))

    return dict(
        w_fc=pad_to(w_fc.astype(compute_dtype), ne_p, hid_p),
        b_fc=pad_to(b_fc.astype(jnp.float32).reshape(1, -1), 1, hid_p),
        w_proj=pad_to(w_proj.astype(compute_dtype), hid_p, ne_p),
        b_proj=pad_to(b_proj.astype(jnp.float32).reshape(1, -1), 1, ne_p),
        n_embd=ne, hidden=hidden, compute_dtype=compute_dtype,
    )


def mlp_forward(x, params, *, tm=None, gelu_approx=False, out_dtype=None):
    """nanoGPT MLP forward. x: (B, T, n_embd); params from prepare_mlp_params."""
    w_fc, b_fc = params["w_fc"], params["b_fc"]
    w_proj, b_proj = params["w_proj"], params["b_proj"]
    ne = params["n_embd"]
    compute_dtype = params["compute_dtype"]
    ne_p, hid_p = w_fc.shape

    B, T, ne_in = x.shape
    assert ne_in == ne, "x feature dim must equal n_embd"
    out_dtype = jnp.dtype(out_dtype) if out_dtype is not None else x.dtype

    M = B * T
    SUB = 16                       # sublane-safe row multiple for f32 and bf16 tiles
    if tm is None:
        tm = 1024 if compute_dtype == jnp.bfloat16 else 256
    TM = max(SUB, min(_round_up(tm, SUB), _round_up(M, SUB)))
    # v7x megacore: the "parallel" row axis is split across 2 TensorCores; make
    # sure there are >=2 row tiles when M is large enough to split.
    if _round_up(M, TM) // TM < 2 and M > SUB:
        TM = max(SUB, _round_up((M + 1) // 2, SUB))
    M_p = _round_up(M, TM)

    # Activations stay in their original dtype; cast happens inside the kernel.
    x2d = x.reshape(M, ne)
    if (M_p, ne_p) != (M, ne):
        x2d = jnp.pad(x2d, ((0, M_p - M), (0, ne_p - ne)))

    TH = _pick_hidden_chunk(hid_p)
    n_chunks = hid_p // TH

    w_item = compute_dtype.itemsize
    bytes_accessed = (
        M_p * ne_p * x2d.dtype.itemsize          # x in
        + (ne_p * hid_p + hid_p * ne_p) * w_item  # weights
        + (hid_p + ne_p) * 4                      # f32 biases
        + M_p * ne_p * out_dtype.itemsize         # out
    )
    cost = pl.CostEstimate(
        flops=4 * M_p * ne_p * hid_p,             # two matmuls
        transcendentals=M_p * hid_p,              # erf/tanh per hidden activation
        bytes_accessed=bytes_accessed,
    )

    kernel = functools.partial(
        _mlp_kernel,
        compute_dtype=compute_dtype,
        chunk=TH,
        n_chunks=n_chunks,
        gelu_approx=gelu_approx,
    )
    vmem_limit = _vmem_limit_bytes()
    grid = (M_p // TM,)

    def build_call(single_buffer: bool):
        def resident_spec(shape):
            # Constant block index -> VMEM-resident across the whole grid.
            if single_buffer:
                return pl.BlockSpec(shape, lambda i: (0, 0),
                                    pipeline_mode=pl.Buffered(1))
            return pl.BlockSpec(shape, lambda i: (0, 0))

        grid_spec = pltpu.PrefetchScalarGridSpec(
            num_scalar_prefetch=0,
            grid=grid,
            in_specs=[
                # Row-tiled activations: new block per grid step (pipelined DMA).
                pl.BlockSpec((TM, ne_p), lambda i: (i, 0)),
                resident_spec((ne_p, hid_p)),
                resident_spec((1, hid_p)),
                resident_spec((hid_p, ne_p)),
                resident_spec((1, ne_p)),
            ],
            out_specs=pl.BlockSpec((TM, ne_p), lambda i: (i, 0)),
        )
        return pl.pallas_call(
            kernel,
            out_shape=jax.ShapeDtypeStruct((M_p, ne_p), out_dtype),
            grid_spec=grid_spec,
            compiler_params=pltpu.CompilerParams(
                dimension_semantics=("parallel",),
                vmem_limit_bytes=vmem_limit,
            ),
            cost_estimate=cost,
        )

    args = (x2d, w_fc, b_fc, w_proj, b_proj)
    try:
        out2d = build_call(single_buffer=True)(*args)
    except Exception:
        # Fallback: this jax version does not accept pl.Buffered(1) resident
        # blocks -> use default double buffering (correct, slightly more VMEM).
        out2d = build_call(single_buffer=False)(*args)

    return out2d[:M, :ne].reshape(B, T, ne)


if __name__ == "__main__":
    # cfg = {'n_embd': 32, 'dropout': 0.0}
    n_embd = 32
    hidden = 4 * n_embd
    B, T = 2, 8

    key = jax.random.PRNGKey(0)
    k_x, k_w1, k_b1, k_w2, k_b2 = jax.random.split(key, 5)

    x = jax.random.normal(k_x, (B, T, n_embd), dtype=jnp.float32)
    # nn.Linear weight is (out, in); the kernel takes the (in, out) transpose.
    w_fc = jax.random.normal(k_w1, (n_embd, hidden), dtype=jnp.float32) * 0.02
    b_fc = jax.random.normal(k_b1, (hidden,), dtype=jnp.float32) * 0.02
    w_proj = jax.random.normal(k_w2, (hidden, n_embd), dtype=jnp.float32) * 0.02
    b_proj = jax.random.normal(k_b2, (n_embd,), dtype=jnp.float32) * 0.02

    # Plain-JAX reference (exact erf GELU; eval-mode dropout == identity).
    ref_h = _gelu_exact_f32(x.reshape(-1, n_embd) @ w_fc + b_fc)
    ref = (ref_h @ w_proj + b_proj).reshape(B, T, n_embd)

    # Default path: bf16 MXU operands, f32 accumulation, exact erf GELU.
    params_bf16 = prepare_mlp_params(w_fc, b_fc, w_proj, b_proj)
    out_bf16 = mlp_forward(x, params_bf16)
    jax.block_until_ready(out_bf16)
    assert out_bf16.shape == ref.shape and out_bf16.dtype == ref.dtype
    assert jnp.allclose(out_bf16, ref, atol=2e-2, rtol=2e-2), "bf16 path mismatch"

    # Opt-in f32 debug path (tolerance allows for MXU f32-emulation rounding).
    params_f32 = prepare_mlp_params(w_fc, b_fc, w_proj, b_proj,
                                    compute_dtype=jnp.float32)
    out_f32 = mlp_forward(x, params_f32)
    jax.block_until_ready(out_f32)
    assert jnp.allclose(out_f32, ref, atol=2e-3, rtol=1e-2), "f32 path mismatch"

    # Cheap tanh-GELU variant (EUP path).
    out_tanh = mlp_forward(x, params_bf16, gelu_approx=True)
    jax.block_until_ready(out_tanh)
    assert jnp.allclose(out_tanh, ref, atol=2e-2, rtol=2e-2), "tanh-GELU path mismatch"

    print("KERNEL_OK")
</pallas_src>

<mosaic_0001>
module attributes {stable_mosaic.version = 11 : i64} {
  func.func @_mlp_kernel(%arg0: i32, %arg1: memref<16x128xf32, #tpu.memory_space<vmem>>, %arg2: memref<128x128xbf16, #tpu.memory_space<vmem>>, %arg3: memref<1x128xf32, #tpu.memory_space<vmem>>, %arg4: memref<128x128xbf16, #tpu.memory_space<vmem>>, %arg5: memref<1x128xf32, #tpu.memory_space<vmem>>, %arg6: memref<16x128xf32, #tpu.memory_space<vmem>>) attributes {dimension_semantics = [#tpu.dimension_semantics<parallel>], iteration_bounds = array<i64: 1>, scalar_prefetch = 0 : i64, scratch_operands = 0 : i64, tpu.core_type = #tpu.core_type<tc>, window_params = [{transform_indices = @transform_0, window_bounds = array<i64: 16, 128>}, {pipeline_mode = #tpu.pipeline_mode<synchronous>, transform_indices = @transform_1, window_bounds = array<i64: 128, 128>}, {pipeline_mode = #tpu.pipeline_mode<synchronous>, transform_indices = @transform_2, window_bounds = array<i64: 1, 128>}, {pipeline_mode = #tpu.pipeline_mode<synchronous>, transform_indices = @transform_3, window_bounds = array<i64: 128, 128>}, {pipeline_mode = #tpu.pipeline_mode<synchronous>, transform_indices = @transform_4, window_bounds = array<i64: 1, 128>}, {transform_indices = @transform_5, window_bounds = array<i64: 16, 128>}]} {
    %c0 = arith.constant 0 : index
    %c0_0 = arith.constant 0 : index
    %0 = vector.load %arg1[%c0, %c0_0] : memref<16x128xf32, #tpu.memory_space<vmem>>, vector<16x128xf32>
    %1 = arith.truncf %0 : vector<16x128xf32> to vector<16x128xbf16>
    %cst = arith.constant 0.000000e+00 : f32
    %2 = vector.broadcast %cst : f32 to vector<16x128xf32>
    %c0_1 = arith.constant 0 : index
    %c0_2 = arith.constant 0 : index
    %3 = vector.load %arg2[%c0_1, %c0_2] : memref<128x128xbf16, #tpu.memory_space<vmem>>, vector<128x128xbf16>
    %cst_3 = arith.constant dense<0.000000e+00> : vector<16x128xf32>
    %4 = tpu.matmul %1, %3, %cst_3 {dimension_numbers = #tpu.dot_dimension_numbers<[1], [0], [0], [1], [0, 0, 1, 1], [], []>} : vector<16x128xbf16>, vector<128x128xbf16>, vector<16x128xf32> -> vector<16x128xf32>
    %c0_4 = arith.constant 0 : index
    %c0_5 = arith.constant 0 : index
    %5 = vector.load %arg3[%c0_4, %c0_5] : memref<1x128xf32, #tpu.memory_space<vmem>>, vector<1x128xf32>
    %6 = vector.broadcast %5 : vector<1x128xf32> to vector<16x128xf32>
    %7 = arith.addf %4, %6 : vector<16x128xf32>
    %cst_6 = arith.constant 5.000000e-01 : f32
    %8 = vector.broadcast %cst_6 : f32 to vector<16x128xf32>
    %9 = arith.mulf %8, %7 : vector<16x128xf32>
    %cst_7 = arith.constant 0.707106769 : f32
    %10 = vector.broadcast %cst_7 : f32 to vector<16x128xf32>
    %11 = arith.mulf %7, %10 : vector<16x128xf32>
    %12 = math.erf %11 : vector<16x128xf32>
    %cst_8 = arith.constant 1.000000e+00 : f32
    %13 = vector.broadcast %cst_8 : f32 to vector<16x128xf32>
    %14 = arith.addf %13, %12 : vector<16x128xf32>
    %15 = arith.mulf %9, %14 : vector<16x128xf32>
    %16 = arith.truncf %15 : vector<16x128xf32> to vector<16x128xbf16>
    %c0_9 = arith.constant 0 : index
    %c0_10 = arith.constant 0 : index
    %17 = vector.load %arg4[%c0_9, %c0_10] : memref<128x128xbf16, #tpu.memory_space<vmem>>, vector<128x128xbf16>
    %cst_11 = arith.constant dense<0.000000e+00> : vector<16x128xf32>
    %18 = tpu.matmul %16, %17, %cst_11 {dimension_numbers = #tpu.dot_dimension_numbers<[1], [0], [0], [1], [0, 0, 1, 1], [], []>} : vector<16x128xbf16>, vector<128x128xbf16>, vector<16x128xf32> -> vector<16x128xf32>
    %19 = arith.addf %2, %18 : vector<16x128xf32>
    %c0_12 = arith.constant 0 : index
    %c0_13 = arith.constant 0 : index
    %20 = vector.load %arg5[%c0_12, %c0_13] : memref<1x128xf32, #tpu.memory_space<vmem>>, vector<1x128xf32>
    %21 = vector.broadcast %20 : vector<1x128xf32> to vector<16x128xf32>
    %22 = arith.addf %19, %21 : vector<16x128xf32>
    %c0_14 = arith.constant 0 : index
    %c0_15 = arith.constant 0 : index
    %23 = vector.load %arg6[%c0_14, %c0_15] : memref<16x128xf32, #tpu.memory_space<vmem>>, vector<16x128xf32>
    tpu.vector_store %arg6[%c0_14, %c0_15], %22 {strides = array<i32>} : memref<16x128xf32, #tpu.memory_space<vmem>>, vector<16x128xf32>,
    return
  }
  func.func @transform_0(%arg0: i32) -> (i32, i32) {
    %c0_i32 = arith.constant 0 : i32
    %c0_i32_0 = arith.constant 0 : i32
    return %arg0, %c0_i32 : i32, i32
  }
  func.func @transform_1(%arg0: i32) -> (i32, i32) {
    %c0_i32 = arith.constant 0 : i32
    %c0_i32_0 = arith.constant 0 : i32
    %c0_i32_1 = arith.constant 0 : i32
    return %c0_i32, %c0_i32_0 : i32, i32
  }
  func.func @transform_2(%arg0: i32) -> (i32, i32) {
    %c0_i32 = arith.constant 0 : i32
    %c0_i32_0 = arith.constant 0 : i32
    %c0_i32_1 = arith.constant 0 : i32
    return %c0_i32, %c0_i32_0 : i32, i32
  }
  func.func @transform_3(%arg0: i32) -> (i32, i32) {
    %c0_i32 = arith.constant 0 : i32
    %c0_i32_0 = arith.constant 0 : i32
    %c0_i32_1 = arith.constant 0 : i32
    return %c0_i32, %c0_i32_0 : i32, i32
  }
  func.func @transform_4(%arg0: i32) -> (i32, i32) {
    %c0_i32 = arith.constant 0 : i32
    %c0_i32_0 = arith.constant 0 : i32
    %c0_i32_1 = arith.constant 0 : i32
    return %c0_i32, %c0_i32_0 : i32, i32
  }
  func.func @transform_5(%arg0: i32) -> (i32, i32) {
    %c0_i32 = arith.constant 0 : i32
    %c0_i32_0 = arith.constant 0 : i32
    return %arg0, %c0_i32 : i32, i32
  }
}

module attributes {stable_mosaic.version = 11 : i64} {
  func.func @_mlp_kernel(%arg0: i32, %arg1: memref<16x128xf32, #tpu.memory_space<vmem>>, %arg2: memref<128x128xbf16, #tpu.memory_space<vmem>>, %arg3: memref<1x128xf32, #tpu.memory_space<vmem>>, %arg4: memref<128x128xbf16, #tpu.memory_space<vmem>>, %arg5: memref<1x128xf32, #tpu.memory_space<vmem>>, %arg6: memref<16x128xf32, #tpu.memory_space<vmem>>) attributes {dimension_semantics = [#tpu.dimension_semantics<parallel>], iteration_bounds = array<i64: 1>, scalar_prefetch = 0 : i64, scratch_operands = 0 : i64, tpu.core_type = #tpu.core_type<tc>, window_params = [{transform_indices = @transform_0, window_bounds = array<i64: 16, 128>}, {pipeline_mode = #tpu.pipeline_mode<synchronous>, transform_indices = @transform_1, window_bounds = array<i64: 128, 128>}, {pipeline_mode = #tpu.pipeline_mode<synchronous>, transform_indices = @transform_2, window_bounds = array<i64: 1, 128>}, {pipeline_mode = #tpu.pipeline_mode<synchronous>, transform_indices = @transform_3, window_bounds = array<i64: 128, 128>}, {pipeline_mode = #tpu.pipeline_mode<synchronous>, transform_indices = @transform_4, window_bounds = array<i64: 1, 128>}, {transform_indices = @transform_5, window_bounds = array<i64: 16, 128>}]} {
    %c0 = arith.constant 0 : index
    %c0_0 = arith.constant 0 : index
    %0 = vector.load %arg1[%c0, %c0_0] : memref<16x128xf32, #tpu.memory_space<vmem>>, vector<16x128xf32>
    %1 = arith.truncf %0 : vector<16x128xf32> to vector<16x128xbf16>
    %cst = arith.constant 0.000000e+00 : f32
    %2 = vector.broadcast %cst : f32 to vector<16x128xf32>
    %c0_1 = arith.constant 0 : index
    %c0_2 = arith.constant 0 : index
    %3 = vector.load %arg2[%c0_1, %c0_2] : memref<128x128xbf16, #tpu.memory_space<vmem>>, vector<128x128xbf16>
    %cst_3 = arith.constant dense<0.000000e+00> : vector<16x128xf32>
    %4 = tpu.matmul %1, %3, %cst_3 {dimension_numbers = #tpu.dot_dimension_numbers<[1], [0], [0], [1], [0, 0, 1, 1], [], []>} : vector<16x128xbf16>, vector<128x128xbf16>, vector<16x128xf32> -> vector<16x128xf32>
    %c0_4 = arith.constant 0 : index
    %c0_5 = arith.constant 0 : index
    %5 = vector.load %arg3[%c0_4, %c0_5] : memref<1x128xf32, #tpu.memory_space<vmem>>, vector<1x128xf32>
    %6 = vector.broadcast %5 : vector<1x128xf32> to vector<16x128xf32>
    %7 = arith.addf %4, %6 : vector<16x128xf32>
    %cst_6 = arith.constant 5.000000e-01 : f32
    %8 = vector.broadcast %cst_6 : f32 to vector<16x128xf32>
    %9 = arith.mulf %8, %7 : vector<16x128xf32>
    %cst_7 = arith.constant 0.707106769 : f32
    %10 = vector.broadcast %cst_7 : f32 to vector<16x128xf32>
    %11 = arith.mulf %7, %10 : vector<16x128xf32>
    %12 = math.erf %11 : vector<16x128xf32>
    %cst_8 = arith.constant 1.000000e+00 : f32
    %13 = vector.broadcast %cst_8 : f32 to vector<16x128xf32>
    %14 = arith.addf %13, %12 : vector<16x128xf32>
    %15 = arith.mulf %9, %14 : vector<16x128xf32>
    %16 = arith.truncf %15 : vector<16x128xf32> to vector<16x128xbf16>
    %c0_9 = arith.constant 0 : index
    %c0_10 = arith.constant 0 : index
    %17 = vector.load %arg4[%c0_9, %c0_10] : memref<128x128xbf16, #tpu.memory_space<vmem>>, vector<128x128xbf16>
    %cst_11 = arith.constant dense<0.000000e+00> : vector<16x128xf32>
    %18 = tpu.matmul %16, %17, %cst_11 {dimension_numbers = #tpu.dot_dimension_numbers<[1], [0], [0], [1], [0, 0, 1, 1], [], []>} : vector<16x128xbf16>, vector<128x128xbf16>, vector<16x128xf32> -> vector<16x128xf32>
    %19 = arith.addf %2, %18 : vector<16x128xf32>
    %c0_12 = arith.constant 0 : index
    %c0_13 = arith.constant 0 : index
    %20 = vector.load %arg5[%c0_12, %c0_13] : memref<1x128xf32, #tpu.memory_space<vmem>>, vector<1x128xf32>
    %21 = vector.broadcast %20 : vector<1x128xf32> to vector<16x128xf32>
    %22 = arith.addf %19, %21 : vector<16x128xf32>
    %c0_14 = arith.constant 0 : index
    %c0_15 = arith.constant 0 : index
    %23 = vector.load %arg6[%c0_14, %c0_15] : memref<16x128xf32, #tpu.memory_space<vmem>>, vector<16x128xf32>
    tpu.vector_store %arg6[%c0_14, %c0_15], %22 {strides = array<i32>} : memref<16x128xf32, #tpu.memory_space<vmem>>, vector<16x128xf32>,
    return
  }
  func.func @transform_0(%arg0: i32) -> (i32, i32) {
    %c0_i32 = arith.constant 0 : i32
    %c0_i32_0 = arith.constant 0 : i32
    return %arg0, %c0_i32 : i32, i32
  }
  func.func @transform_1(%arg0: i32) -> (i32, i32) {
    %c0_i32 = arith.constant 0 : i32
    %c0_i32_0 = arith.constant 0 : i32
    %c0_i32_1 = arith.constant 0 : i32
    return %c0_i32, %c0_i32_0 : i32, i32
  }
  func.func @transform_2(%arg0: i32) -> (i32, i32) {
    %c0_i32 = arith.constant 0 : i32
    %c0_i32_0 = arith.constant 0 : i32
    %c0_i32_1 = arith.constant 0 : i32
    return %c0_i32, %c0_i32_0 : i32, i32
  }
  func.func @transform_3(%arg0: i32) -> (i32, i32) {
    %c0_i32 = arith.constant 0 : i32
    %c0_i32_0 = arith.constant 0 : i32
    %c0_i32_1 = arith.constant 0 : i32
    return %c0_i32, %c0_i32_0 : i32, i32
  }
  func.func @transform_4(%arg0: i32) -> (i32, i32) {
    %c0_i32 = arith.constant 0 : i32
    %c0_i32_0 = arith.constant 0 : i32
    %c0_i32_1 = arith.constant 0 : i32
    return %c0_i32, %c0_i32_0 : i32, i32
  }
  func.func @transform_5(%arg0: i32) -> (i32, i32) {
    %c0_i32 = arith.constant 0 : i32
    %c0_i32_0 = arith.constant 0 : i32
    return %arg0, %c0_i32 : i32, i32
  }
}

</mosaic_0001>

<llo_original>
// kernel: tpu_custom_call.1
$region0: #{tpu_custom_call.1}
  #allocation0 [shape = 'u32[]', space=smem, size = 0x4, offset = 0x4, fixed_abs, tag = 'smem constant byte address 0x4 - core index']
  #allocation1 [shape = 'u32[144,128]{1,0:T(1,128)}', space=vmem, size = 0x12000, scoped, tag = 'internal scratch']
  %s0 = inlined_call_operand.hbm [shape: f32[16,128], index: 0, kind: input, shape index: {}]
  %s1 = inlined_call_operand.hbm [shape: bf16[128,128], index: 1, kind: input, shape index: {}]
  %s2 = inlined_call_operand.vmem [shape: f32[1,128], index: 2, kind: input, shape index: {}]
  %s3 = inlined_call_operand.hbm [shape: bf16[128,128], index: 3, kind: input, shape index: {}]
  %s4 = inlined_call_operand.vmem [shape: f32[1,128], index: 4, kind: input, shape index: {}]
  %s5 = inlined_call_operand.hbm [shape: f32[16,128], index: 5, kind: output, shape index: {}]
  %s6 = sld [smem:[#allocation0]]
  $region42: #{tpu_custom_call.1} parent=0
    _
  %s8 = ssub.s32 1, %s6
  %s9 = scalar_select 0, %s8, %s6
  $region1: #{tpu_custom_call.1} parent=0
    #allocation2 [shape = 'u8[8192]{0}', space=vmem, size = 0x2000, scoped, tag = 'input window, operand 0, single buffered']
    #allocation3 [shape = 's32[1]{0}', space=sflag, size = 0x4, scoped, tag = 'scoped memory for tpu_custom_call.1']
    #allocation4 [shape = 's32[1]{0}', space=sflag, size = 0x4, scoped, tag = 'scoped memory for tpu_custom_call.1']
    #allocation5 [shape = 'u8[32768]{0}', space=vmem, size = 0x8000, scoped, tag = 'input window, operand 1, single buffered']
    #allocation6 [shape = 's32[1]{0}', space=sflag, size = 0x4, scoped, tag = 'scoped memory for tpu_custom_call.1']
    #allocation7 [shape = 'u8[32768]{0}', space=vmem, size = 0x8000, scoped, tag = 'input window, operand 3, single buffered']
    #allocation8 [shape = 'u8[8192]{0}', space=vmem, size = 0x2000, scoped, tag = 'output window, operand 0, single buffered']
    %10 = vsyncpa [#allocation3], 0
    %11 = vsyncpa [#allocation6], 0
    %12 = vsyncpa [#allocation4], 0
    // Predicated region
    $region2: #{tpu_custom_call.1} parent=1 // pred_check
      _
    $region3: #{tpu_custom_call.1} parent=1 // pred_check_branch
      %14 = sbr.rel (0) target = $region5
    $region4: #{tpu_custom_call.1} parent=1 // pred_region
      %s16 = ssub.s32 256, 256
      %17 = vsyncadd [#allocation3], %s16
      %s18 = sshll.u32 [#allocation2], 4
      %s19 = int_to_ptr.vmem [resolvable:$true] %s18
      %24 = dma.hbm_to_vmem [thread:$0]  %s0, 256, %s19, [#allocation3], 128, 128, 8
    $region5: #{tpu_custom_call.1} parent=1 // pred_fallthru
      _
    // Predicated region
    $region6: #{tpu_custom_call.1} parent=1 // pred_check
      _
    $region7: #{tpu_custom_call.1} parent=1 // pred_check_branch
      %26 = sbr.rel (0) target = $region9
    $region8: #{tpu_custom_call.1} parent=1 // pred_region
      %s28 = ssub.s32 1024, 1024
      %29 = vsyncadd [#allocation6], %s28
      %s30 = sshll.u32 [#allocation5], 4
      %s31 = int_to_ptr.vmem [resolvable:$true] %s30
      %36 = dma.hbm_to_vmem [thread:$0]  %s1, 1024, %s31, [#allocation6], 64, 64, 4
    $region9: #{tpu_custom_call.1} parent=1 // pred_fallthru
      _
    // Predicated region
    $region10: #{tpu_custom_call.1} parent=1 // pred_check
      _
    $region11: #{tpu_custom_call.1} parent=1 // pred_check_branch
      %38 = sbr.rel (0) target = $region13
    $region12: #{tpu_custom_call.1} parent=1 // pred_region
      _
    $region13: #{tpu_custom_call.1} parent=1 // pred_fallthru
      _
    // Predicated region
    $region14: #{tpu_custom_call.1} parent=1 // pred_check
      _
    $region15: #{tpu_custom_call.1} parent=1 // pred_check_branch
      %40 = sbr.rel (0) target = $region17
    $region16: #{tpu_custom_call.1} parent=1 // pred_region
      %s42 = ssub.s32 1024, 1024
      %43 = vsyncadd [#allocation6], %s42
      %s44 = sshll.u32 [#allocation7], 4
      %s45 = int_to_ptr.vmem [resolvable:$true] %s44
      %50 = dma.hbm_to_vmem [thread:$0]  %s3, 1024, %s45, [#allocation6], 64, 64, 4
    $region17: #{tpu_custom_call.1} parent=1 // pred_fallthru
      _
    // Predicated region
    $region18: #{tpu_custom_call.1} parent=1 // pred_check
      _
    $region19: #{tpu_custom_call.1} parent=1 // pred_check_branch
      %52 = sbr.rel (0) target = $region21
    $region20: #{tpu_custom_call.1} parent=1 // pred_region
      _
    $region21: #{tpu_custom_call.1} parent=1 // pred_fallthru
      _
    // Predicated region
    $region22: #{tpu_custom_call.1} parent=1 // pred_check
      _
    $region23: #{tpu_custom_call.1} parent=1 // pred_check_branch
      %54 = sbr.rel (0) target = $region25
    $region24: #{tpu_custom_call.1} parent=1 // pred_region
      %55 = dma.done [#allocation3], 256
    $region25: #{tpu_custom_call.1} parent=1 // pred_fallthru
      _
    // Predicated region
    $region26: #{tpu_custom_call.1} parent=1 // pred_check
      _
    $region27: #{tpu_custom_call.1} parent=1 // pred_check_branch
      %57 = sbr.rel (0) target = $region29
    $region28: #{tpu_custom_call.1} parent=1 // pred_region
      %58 = dma.done [#allocation6], 1024
    $region29: #{tpu_custom_call.1} parent=1 // pred_fallthru
      _
    // Predicated region
    $region30: #{tpu_custom_call.1} parent=1 // pred_check
      _
    $region31: #{tpu_custom_call.1} parent=1 // pred_check_branch
      %60 = sbr.rel (0) target = $region33
    $region32: #{tpu_custom_call.1} parent=1 // pred_region
      %61 = dma.done [#allocation6], 1024
    $region33: #{tpu_custom_call.1} parent=1 // pred_fallthru
      _
    %v63 = vld [vmem:[#allocation2] sm:$0xff]
    %v64 = vld [vmem:[#allocation2 + $0x8] sm:$0xff]
    %v65 = vpack.c.bf16 %v64, %v63
    %v66 = vld [vmem:[#allocation5] sm:$0xf]
    %v67 = vld [vmem:[#allocation5 + $0x4] sm:$0xf]
    %v68 = vld [vmem:[#allocation5 + $0x8] sm:$0xf]
    %v69 = vld [vmem:[#allocation5 + $0xc] sm:$0xf]
    %v70 = vld [vmem:[#allocation5 + $0x10] sm:$0xf]
    %v71 = vld [vmem:[#allocation5 + $0x14] sm:$0xf]
    %v72 = vld [vmem:[#allocation5 + $0x18] sm:$0xf]
    %v73 = vld [vmem:[#allocation5 + $0x1c] sm:$0xf]
    %v74 = vld [vmem:[#allocation5 + $0x20] sm:$0xf]
    %v75 = vld [vmem:[#allocation5 + $0x24] sm:$0xf]
    %v76 = vld [vmem:[#allocation5 + $0x28] sm:$0xf]
    %v77 = vld [vmem:[#allocation5 + $0x2c] sm:$0xf]
    %v78 = vld [vmem:[#allocation5 + $0x30] sm:$0xf]
    %v79 = vld [vmem:[#allocation5 + $0x34] sm:$0xf]
    %v80 = vld [vmem:[#allocation5 + $0x38] sm:$0xf]
    %v81 = vld [vmem:[#allocation5 + $0x3c] sm:$0xf]
    %v82 = vld [vmem:[%s2] sm:$0x1]
    %v84 = vlaneseq
    %v85 = vshrl.u32 %v84, 7
    %v86 = vsub.s32 0, %v85
    %v87 = vrot.slane %v82, %v86
    %v105 = vunpack.c.l.b16 %v66
    %v106 = vunpack.c.l.b16 %v67
    %v107 = vunpack.c.l.b16 %v68
    %v108 = vunpack.c.l.b16 %v69
    %v109 = vunpack.c.l.b16 %v70
    %v110 = vunpack.c.l.b16 %v71
    %v111 = vunpack.c.l.b16 %v72
    %v112 = vunpack.c.l.b16 %v73
    %v113 = vunpack.c.l.b16 %v74
    %v114 = vunpack.c.l.b16 %v75
    %v115 = vunpack.c.l.b16 %v76
    %v116 = vunpack.c.l.b16 %v77
    %v117 = vunpack.c.l.b16 %v78
    %v118 = vunpack.c.l.b16 %v79
    %v119 = vunpack.c.l.b16 %v80
    %v120 = vunpack.c.l.b16 %v81
    %v121 = vpack.c.b16 %v106, %v105
    %v122 = vpack.c.b16 %v108, %v107
    %v123 = vpack.c.b16 %v110, %v109
    %v124 = vpack.c.b16 %v112, %v111
    %v125 = vpack.c.b16 %v114, %v113
    %v126 = vpack.c.b16 %v116, %v115
    %v127 = vpack.c.b16 %v118, %v117
    %v128 = vpack.c.b16 %v120, %v119
    %137 = vmatprep.subr.bf16.mxu0 0
    %138 = vmatpush1.bf16.msra.mxu0 %v128
    %139 = vmatprep.subr.bf16.mxu0 0
    %140 = vmatpush1.bf16.msra.mxu0 %v127
    %141 = vmatprep.subr.bf16.mxu0 0
    %142 = vmatpush1.bf16.msra.mxu0 %v126
    %143 = vmatprep.subr.bf16.mxu0 0
    %144 = vmatpush1.bf16.msra.mxu0 %v125
    %145 = vmatprep.subr.bf16.mxu0 0
    %146 = vmatpush1.bf16.msra.mxu0 %v124
    %147 = vmatprep.subr.bf16.mxu0 0
    %148 = vmatpush1.bf16.msra.mxu0 %v123
    %149 = vmatprep.subr.bf16.mxu0 0
    %150 = vmatpush1.bf16.msra.mxu0 %v122
    %151 = vmatprep.subr.bf16.mxu0 0
    %152 = vmatpush1.bf16.msra.mxu0 %v121
    %153 = vmatprep.subr.bf16.mxu0 0
    %154 = vmatpush2.bf16.msra.mxu0 0
    %155 = vmatprep.subr.bf16.mxu0 0
    %156 = vmatpush2.bf16.msra.mxu0 0
    %157 = vmatprep.subr.bf16.mxu0 0
    %158 = vmatpush2.bf16.msra.mxu0 0
    %159 = vmatprep.subr.bf16.mxu0 0
    %160 = vmatpush2.bf16.msra.mxu0 0
    %161 = vmatprep.subr.bf16.mxu0 0
    %162 = vmatpush2.bf16.msra.mxu0 0
    %163 = vmatprep.subr.bf16.mxu0 0
    %164 = vmatpush2.bf16.msra.mxu0 0
    %165 = vmatprep.subr.bf16.mxu0 0
    %166 = vmatpush2.bf16.msra.mxu0 0
    %167 = vmatprep.subr.bf16.mxu0 0
    %168 = vmatpush2.bf16.msra.mxu0 0
    %169 = vmatprep.mubr.bf16.mxu0 0
    %170 = vmatmul.mubr.bf16.gmra.mxu0 %v65
    %v171 = vpop.f32.mrf.mxu0
    %v172 = vadd.f32 %v87, %v171
    %v173 = vpop.f32.mrf.mxu0
    %v174 = vpop.f32.mrf.mxu0
    %v175 = vadd.f32 %v87, %v174
    %v176 = vpop.f32.mrf.mxu0
    %177 = vdwg.mxu0
    %v178 = vmul.f32 %v172, 0.5
    %v179 = vmul.f32 %v175, 0.5
    %v180 = vmul.f32 %v172, 0.70710677
    %v181 = vmul.f32 %v175, 0.70710677
    %v182 = verf.f32.pop %v180
    %v183 = verf.f32.pop %v181
    %v184 = vadd.f32 %v182, 1.0
    %v185 = vadd.f32 %v183, 1.0
    %v186 = vmul.f32 %v178, %v184
    %v187 = vmul.f32 %v179, %v185
    %v188 = vpack.c.bf16 %v187, %v186
    %v189 = vld [vmem:[#allocation7] sm:$0xf]
    %v190 = vld [vmem:[#allocation7 + $0x4] sm:$0xf]
    %v191 = vld [vmem:[#allocation7 + $0x8] sm:$0xf]
    %v192 = vld [vmem:[#allocation7 + $0xc] sm:$0xf]
    %v193 = vld [vmem:[#allocation7 + $0x10] sm:$0xf]
    %v194 = vld [vmem:[#allocation7 + $0x14] sm:$0xf]
    %v195 = vld [vmem:[#allocation7 + $0x18] sm:$0xf]
    %v196 = vld [vmem:[#allocation7 + $0x1c] sm:$0xf]
    %v197 = vld [vmem:[#allocation7 + $0x20] sm:$0xf]
    %v198 = vld [vmem:[#allocation7 + $0x24] sm:$0xf]
    %v199 = vld [vmem:[#allocation7 + $0x28] sm:$0xf]
    %v200 = vld [vmem:[#allocation7 + $0x2c] sm:$0xf]
    %v201 = vld [vmem:[#allocation7 + $0x30] sm:$0xf]
    %v202 = vld [vmem:[#allocation7 + $0x34] sm:$0xf]
    %v203 = vld [vmem:[#allocation7 + $0x38] sm:$0xf]
    %v204 = vld [vmem:[#allocation7 + $0x3c] sm:$0xf]
    %v205 = vld [vmem:[%s4] sm:$0x1]
    %v207 = vlaneseq
    %v208 = vshrl.u32 %v207, 7
    %v209 = vsub.s32 0, %v208
    %v210 = vrot.slane %v205, %v209
    %v228 = vunpack.c.l.b16 %v189
    %v229 = vunpack.c.l.b16 %v190
    %v230 = vunpack.c.l.b16 %v191
    %v231 = vunpack.c.l.b16 %v192
    %v232 = vunpack.c.l.b16 %v193
    %v233 = vunpack.c.l.b16 %v194
    %v234 = vunpack.c.l.b16 %v195
    %v235 = vunpack.c.l.b16 %v196
    %v236 = vunpack.c.l.b16 %v197
    %v237 = vunpack.c.l.b16 %v198
    %v238 = vunpack.c.l.b16 %v199
    %v239 = vunpack.c.l.b16 %v200
    %v240 = vunpack.c.l.b16 %v201
    %v241 = vunpack.c.l.b16 %v202
    %v242 = vunpack.c.l.b16 %v203
    %v243 = vunpack.c.l.b16 %v204
    %v244 = vpack.c.b16 %v229, %v228
    %v245 = vpack.c.b16 %v231, %v230
    %v246 = vpack.c.b16 %v233, %v232
    %v247 = vpack.c.b16 %v235, %v234
    %v248 = vpack.c.b16 %v237, %v236
    %v249 = vpack.c.b16 %v239, %v238
    %v250 = vpack.c.b16 %v241, %v240
    %v251 = vpack.c.b16 %v243, %v242
    %260 = vmatprep.subr.bf16.mxu0 0
    %261 = vmatpush1.bf16.msra.mxu0 %v251
    %262 = vmatprep.subr.bf16.mxu0 0
    %263 = vmatpush1.bf16.msra.mxu0 %v250
    %264 = vmatprep.subr.bf16.mxu0 0
    %265 = vmatpush1.bf16.msra.mxu0 %v249
    %266 = vmatprep.subr.bf16.mxu0 0
    %267 = vmatpush1.bf16.msra.mxu0 %v248
    %268 = vmatprep.subr.bf16.mxu0 0
    %269 = vmatpush1.bf16.msra.mxu0 %v247
    %270 = vmatprep.subr.bf16.mxu0 0
    %271 = vmatpush1.bf16.msra.mxu0 %v246
    %272 = vmatprep.subr.bf16.mxu0 0
    %273 = vmatpush1.bf16.msra.mxu0 %v245
    %274 = vmatprep.subr.bf16.mxu0 0
    %275 = vmatpush1.bf16.msra.mxu0 %v244
    %276 = vmatprep.subr.bf16.mxu0 0
    %277 = vmatpush2.bf16.msra.mxu0 0
    %278 = vmatprep.subr.bf16.mxu0 0
    %279 = vmatpush2.bf16.msra.mxu0 0
    %280 = vmatprep.subr.bf16.mxu0 0
    %281 = vmatpush2.bf16.msra.mxu0 0
    %282 = vmatprep.subr.bf16.mxu0 0
    %283 = vmatpush2.bf16.msra.mxu0 0
    %284 = vmatprep.subr.bf16.mxu0 0
    %285 = vmatpush2.bf16.msra.mxu0 0
    %286 = vmatprep.subr.bf16.mxu0 0
    %287 = vmatpush2.bf16.msra.mxu0 0
    %288 = vmatprep.subr.bf16.mxu0 0
    %289 = vmatpush2.bf16.msra.mxu0 0
    %290 = vmatprep.subr.bf16.mxu0 0
    %291 = vmatpush2.bf16.msra.mxu0 0
    %292 = vmatprep.mubr.bf16.mxu0 0
    %293 = vmatmul.mubr.bf16.gmra.mxu0 %v188
    %v294 = vpop.f32.mrf.mxu0
    %v295 = vadd.f32 %v210, %v294
    %v296 = vpop.f32.mrf.mxu0
    %v297 = vpop.f32.mrf.mxu0
    %v298 = vadd.f32 %v210, %v297
    %v299 = vpop.f32.mrf.mxu0
    %300 = vdwg.mxu0
    %301 = vst [vmem:[#allocation8] sm:$0xff] %v295
    %302 = vst [vmem:[#allocation8 + $0x8] sm:$0xff] %v298
    // Predicated region
    $region34: #{tpu_custom_call.1} parent=1 // pred_check
      _
    $region35: #{tpu_custom_call.1} parent=1 // pred_check_branch
      %304 = sbr.rel (0) target = $region37
    $region36: #{tpu_custom_call.1} parent=1 // pred_region
      %s306 = ssub.s32 256, 256
      %307 = vsyncadd [#allocation4], %s306
      %s308 = sshll.u32 [#allocation8], 4
      %s309 = int_to_ptr.vmem [resolvable:$true] %s308
      %314 = dma.vmem_to_hbm [thread:$0]  %s309, 256, %s5, [#allocation4], 128, 128, 8
    $region37: #{tpu_custom_call.1} parent=1 // pred_fallthru
      _
    // Predicated region
    $region38: #{tpu_custom_call.1} parent=1 // pred_check
      _
    $region39: #{tpu_custom_call.1} parent=1 // pred_check_branch
      %316 = sbr.rel (0) target = $region41
    $region40: #{tpu_custom_call.1} parent=1 // pred_region
      %317 = dma.done [#allocation4], 256
    $region41: #{tpu_custom_call.1} parent=1 // pred_fallthru
      _
    %318 = vsyncpa [#allocation3], 1
    %319 = vsyncpa [#allocation6], 1
    %320 = vsyncpa [#allocation4], 1

// kernel: tpu_custom_call.1
$region0: #{tpu_custom_call.1}
  #allocation0 [shape = 'u32[]', space=smem, size = 0x4, offset = 0x4, fixed_abs, tag = 'smem constant byte address 0x4 - core index']
  #allocation1 [shape = 'u32[144,128]{1,0:T(1,128)}', space=vmem, size = 0x12000, scoped, tag = 'internal scratch']
  %s0 = inlined_call_operand.hbm [shape: f32[16,128], index: 0, kind: input, shape index: {}]
  %s1 = inlined_call_operand.hbm [shape: bf16[128,128], index: 1, kind: input, shape index: {}]
  %s2 = inlined_call_operand.vmem [shape: f32[1,128], index: 2, kind: input, shape index: {}]
  %s3 = inlined_call_operand.hbm [shape: bf16[128,128], index: 3, kind: input, shape index: {}]
  %s4 = inlined_call_operand.vmem [shape: f32[1,128], index: 4, kind: input, shape index: {}]
  %s5 = inlined_call_operand.hbm [shape: f32[16,128], index: 5, kind: output, shape index: {}]
  %s6 = sld [smem:[#allocation0]]
  $region42: #{tpu_custom_call.1} parent=0
    _
  %s8 = ssub.s32 1, %s6
  %s9 = scalar_select 0, %s8, %s6
  $region1: #{tpu_custom_call.1} parent=0
    #allocation2 [shape = 'u8[8192]{0}', space=vmem, size = 0x2000, scoped, tag = 'input window, operand 0, single buffered']
    #allocation3 [shape = 's32[1]{0}', space=sflag, size = 0x4, scoped, tag = 'scoped memory for tpu_custom_call.1']
    #allocation4 [shape = 's32[1]{0}', space=sflag, size = 0x4, scoped, tag = 'scoped memory for tpu_custom_call.1']
    #allocation5 [shape = 'u8[32768]{0}', space=vmem, size = 0x8000, scoped, tag = 'input window, operand 1, single buffered']
    #allocation6 [shape = 's32[1]{0}', space=sflag, size = 0x4, scoped, tag = 'scoped memory for tpu_custom_call.1']
    #allocation7 [shape = 'u8[32768]{0}', space=vmem, size = 0x8000, scoped, tag = 'input window, operand 3, single buffered']
    #allocation8 [shape = 'u8[8192]{0}', space=vmem, size = 0x2000, scoped, tag = 'output window, operand 0, single buffered']
    %10 = vsyncpa [#allocation3], 0
    %11 = vsyncpa [#allocation6], 0
    %12 = vsyncpa [#allocation4], 0
    // Predicated region
    $region2: #{tpu_custom_call.1} parent=1 // pred_check
      _
    $region3: #{tpu_custom_call.1} parent=1 // pred_check_branch
      %14 = sbr.rel (0) target = $region5
    $region4: #{tpu_custom_call.1} parent=1 // pred_region
      %s16 = ssub.s32 256, 256
      %17 = vsyncadd [#allocation3], %s16
      %s18 = sshll.u32 [#allocation2], 4
      %s19 = int_to_ptr.vmem [resolvable:$true] %s18
      %24 = dma.hbm_to_vmem [thread:$0]  %s0, 256, %s19, [#allocation3], 128, 128, 8
    $region5: #{tpu_custom_call.1} parent=1 // pred_fallthru
      _
    // Predicated region
    $region6: #{tpu_custom_call.1} parent=1 // pred_check
      _
    $region7: #{tpu_custom_call.1} parent=1 // pred_check_branch
      %26 = sbr.rel (0) target = $region9
    $region8: #{tpu_custom_call.1} parent=1 // pred_region
      %s28 = ssub.s32 1024, 1024
      %29 = vsyncadd [#allocation6], %s28
      %s30 = sshll.u32 [#allocation5], 4
      %s31 = int_to_ptr.vmem [resolvable:$true] %s30
      %36 = dma.hbm_to_vmem [thread:$0]  %s1, 1024, %s31, [#allocation6], 64, 64, 4
    $region9: #{tpu_custom_call.1} parent=1 // pred_fallthru
      _
    // Predicated region
    $region10: #{tpu_custom_call.1} parent=1 // pred_check
      _
    $region11: #{tpu_custom_call.1} parent=1 // pred_check_branch
      %38 = sbr.rel (0) target = $region13
    $region12: #{tpu_custom_call.1} parent=1 // pred_region
      _
    $region13: #{tpu_custom_call.1} parent=1 // pred_fallthru
      _
    // Predicated region
    $region14: #{tpu_custom_call.1} parent=1 // pred_check
      _
    $region15: #{tpu_custom_call.1} parent=1 // pred_check_branch
      %40 = sbr.rel (0) target = $region17
    $region16: #{tpu_custom_call.1} parent=1 // pred_region
      %s42 = ssub.s32 1024, 1024
      %43 = vsyncadd [#allocation6], %s42
      %s44 = sshll.u32 [#allocation7], 4
      %s45 = int_to_ptr.vmem [resolvable:$true] %s44
      %50 = dma.hbm_to_vmem [thread:$0]  %s3, 1024, %s45, [#allocation6], 64, 64, 4
    $region17: #{tpu_custom_call.1} parent=1 // pred_fallthru
      _
    // Predicated region
    $region18: #{tpu_custom_call.1} parent=1 // pred_check
      _
    $region19: #{tpu_custom_call.1} parent=1 // pred_check_branch
      %52 = sbr.rel (0) target = $region21
    $region20: #{tpu_custom_call.1} parent=1 // pred_region
      _
    $region21: #{tpu_custom_call.1} parent=1 // pred_fallthru
      _
    // Predicated region
    $region22: #{tpu_custom_call.1} parent=1 // pred_check
      _
    $region23: #{tpu_custom_call.1} parent=1 // pred_check_branch
      %54 = sbr.rel (0) target = $region25
    $region24: #{tpu_custom_call.1} parent=1 // pred_region
      %55 = dma.done [#allocation3], 256
    $region25: #{tpu_custom_call.1} parent=1 // pred_fallthru
      _
    // Predicated region
    $region26: #{tpu_custom_call.1} parent=1 // pred_check
      _
    $region27: #{tpu_custom_call.1} parent=1 // pred_check_branch
      %57 = sbr.rel (0) target = $region29
    $region28: #{tpu_custom_call.1} parent=1 // pred_region
      %58 = dma.done [#allocation6], 1024
    $region29: #{tpu_custom_call.1} parent=1 // pred_fallthru
      _
    // Predicated region
    $region30: #{tpu_custom_call.1} parent=1 // pred_check
      _
    $region31: #{tpu_custom_call.1} parent=1 // pred_check_branch
      %60 = sbr.rel (0) target = $region33
    $region32: #{tpu_custom_call.1} parent=1 // pred_region
      %61 = dma.done [#allocation6], 1024
    $region33: #{tpu_custom_call.1} parent=1 // pred_fallthru
      _
    %v63 = vld [vmem:[#allocation2] sm:$0xff]
    %v64 = vld [vmem:[#allocation2 + $0x8] sm:$0xff]
    %v65 = vpack.c.bf16 %v64, %v63
    %v66 = vld [vmem:[#allocation5] sm:$0xf]
    %v67 = vld [vmem:[#allocation5 + $0x4] sm:$0xf]
    %v68 = vld [vmem:[#allocation5 + $0x8] sm:$0xf]
    %v69 = vld [vmem:[#allocation5 + $0xc] sm:$0xf]
    %v70 = vld [vmem:[#allocation5 + $0x10] sm:$0xf]
    %v71 = vld [vmem:[#allocation5 + $0x14] sm:$0xf]
    %v72 = vld [vmem:[#allocation5 + $0x18] sm:$0xf]
    %v73 = vld [vmem:[#allocation5 + $0x1c] sm:$0xf]
    %v74 = vld [vmem:[#allocation5 + $0x20] sm:$0xf]
    %v75 = vld [vmem:[#allocation5 + $0x24] sm:$0xf]
    %v76 = vld [vmem:[#allocation5 + $0x28] sm:$0xf]
    %v77 = vld [vmem:[#allocation5 + $0x2c] sm:$0xf]
    %v78 = vld [vmem:[#allocation5 + $0x30] sm:$0xf]
    %v79 = vld [vmem:[#allocation5 + $0x34] sm:$0xf]
    %v80 = vld [vmem:[#allocation5 + $0x38] sm:$0xf]
    %v81 = vld [vmem:[#allocation5 + $0x3c] sm:$0xf]
    %v82 = vld [vmem:[%s2] sm:$0x1]
    %v84 = vlaneseq
    %v85 = vshrl.u32 %v84, 7
    %v86 = vsub.s32 0, %v85
    %v87 = vrot.slane %v82, %v86
    %v105 = vunpack.c.l.b16 %v66
    %v106 = vunpack.c.l.b16 %v67
    %v107 = vunpack.c.l.b16 %v68
    %v108 = vunpack.c.l.b16 %v69
    %v109 = vunpack.c.l.b16 %v70
    %v110 = vunpack.c.l.b16 %v71
    %v111 = vunpack.c.l.b16 %v72
    %v112 = vunpack.c.l.b16 %v73
    %v113 = vunpack.c.l.b16 %v74
    %v114 = vunpack.c.l.b16 %v75
    %v115 = vunpack.c.l.b16 %v76
    %v116 = vunpack.c.l.b16 %v77
    %v117 = vunpack.c.l.b16 %v78
    %v118 = vunpack.c.l.b16 %v79
    %v119 = vunpack.c.l.b16 %v80
    %v120 = vunpack.c.l.b16 %v81
    %v121 = vpack.c.b16 %v106, %v105
    %v122 = vpack.c.b16 %v108, %v107
    %v123 = vpack.c.b16 %v110, %v109
    %v124 = vpack.c.b16 %v112, %v111
    %v125 = vpack.c.b16 %v114, %v113
    %v126 = vpack.c.b16 %v116, %v115
    %v127 = vpack.c.b16 %v118, %v117
    %v128 = vpack.c.b16 %v120, %v119
    %137 = vmatprep.subr.bf16.mxu0 0
    %138 = vmatpush1.bf16.msra.mxu0 %v128
    %139 = vmatprep.subr.bf16.mxu0 0
    %140 = vmatpush1.bf16.msra.mxu0 %v127
    %141 = vmatprep.subr.bf16.mxu0 0
    %142 = vmatpush1.bf16.msra.mxu0 %v126
    %143 = vmatprep.subr.bf16.mxu0 0
    %144 = vmatpush1.bf16.msra.mxu0 %v125
    %145 = vmatprep.subr.bf16.mxu0 0
    %146 = vmatpush1.bf16.msra.mxu0 %v124
    %147 = vmatprep.subr.bf16.mxu0 0
    %148 = vmatpush1.bf16.msra.mxu0 %v123
    %149 = vmatprep.subr.bf16.mxu0 0
    %150 = vmatpush1.bf16.msra.mxu0 %v122
    %151 = vmatprep.subr.bf16.mxu0 0
    %152 = vmatpush1.bf16.msra.mxu0 %v121
    %153 = vmatprep.subr.bf16.mxu0 0
    %154 = vmatpush2.bf16.msra.mxu0 0
    %155 = vmatprep.subr.bf16.mxu0 0
    %156 = vmatpush2.bf16.msra.mxu0 0
    %157 = vmatprep.subr.bf16.mxu0 0
    %158 = vmatpush2.bf16.msra.mxu0 0
    %159 = vmatprep.subr.bf16.mxu0 0
    %160 = vmatpush2.bf16.msra.mxu0 0
    %161 = vmatprep.subr.bf16.mxu0 0
    %162 = vmatpush2.bf16.msra.mxu0 0
    %163 = vmatprep.subr.bf16.mxu0 0
    %164 = vmatpush2.bf16.msra.mxu0 0
    %165 = vmatprep.subr.bf16.mxu0 0
    %166 = vmatpush2.bf16.msra.mxu0 0
    %167 = vmatprep.subr.bf16.mxu0 0
    %168 = vmatpush2.bf16.msra.mxu0 0
    %169 = vmatprep.mubr.bf16.mxu0 0
    %170 = vmatmul.mubr.bf16.gmra.mxu0 %v65
    %v171 = vpop.f32.mrf.mxu0
    %v172 = vadd.f32 %v87, %v171
    %v173 = vpop.f32.mrf.mxu0
    %v174 = vpop.f32.mrf.mxu0
    %v175 = vadd.f32 %v87, %v174
    %v176 = vpop.f32.mrf.mxu0
    %177 = vdwg.mxu0
    %v178 = vmul.f32 %v172, 0.5
    %v179 = vmul.f32 %v175, 0.5
    %v180 = vmul.f32 %v172, 0.70710677
    %v181 = vmul.f32 %v175, 0.70710677
    %v182 = verf.f32.pop %v180
    %v183 = verf.f32.pop %v181
    %v184 = vadd.f32 %v182, 1.0
    %v185 = vadd.f32 %v183, 1.0
    %v186 = vmul.f32 %v178, %v184
    %v187 = vmul.f32 %v179, %v185
    %v188 = vpack.c.bf16 %v187, %v186
    %v189 = vld [vmem:[#allocation7] sm:$0xf]
    %v190 = vld [vmem:[#allocation7 + $0x4] sm:$0xf]
    %v191 = vld [vmem:[#allocation7 + $0x8] sm:$0xf]
    %v192 = vld [vmem:[#allocation7 + $0xc] sm:$0xf]
    %v193 = vld [vmem:[#allocation7 + $0x10] sm:$0xf]
    %v194 = vld [vmem:[#allocation7 + $0x14] sm:$0xf]
    %v195 = vld [vmem:[#allocation7 + $0x18] sm:$0xf]
    %v196 = vld [vmem:[#allocation7 + $0x1c] sm:$0xf]
    %v197 = vld [vmem:[#allocation7 + $0x20] sm:$0xf]
    %v198 = vld [vmem:[#allocation7 + $0x24] sm:$0xf]
    %v199 = vld [vmem:[#allocation7 + $0x28] sm:$0xf]
    %v200 = vld [vmem:[#allocation7 + $0x2c] sm:$0xf]
    %v201 = vld [vmem:[#allocation7 + $0x30] sm:$0xf]
    %v202 = vld [vmem:[#allocation7 + $0x34] sm:$0xf]
    %v203 = vld [vmem:[#allocation7 + $0x38] sm:$0xf]
    %v204 = vld [vmem:[#allocation7 + $0x3c] sm:$0xf]
    %v205 = vld [vmem:[%s4] sm:$0x1]
    %v207 = vlaneseq
    %v208 = vshrl.u32 %v207, 7
    %v209 = vsub.s32 0, %v208
    %v210 = vrot.slane %v205, %v209
    %v228 = vunpack.c.l.b16 %v189
    %v229 = vunpack.c.l.b16 %v190
    %v230 = vunpack.c.l.b16 %v191
    %v231 = vunpack.c.l.b16 %v192
    %v232 = vunpack.c.l.b16 %v193
    %v233 = vunpack.c.l.b16 %v194
    %v234 = vunpack.c.l.b16 %v195
    %v235 = vunpack.c.l.b16 %v196
    %v236 = vunpack.c.l.b16 %v197
    %v237 = vunpack.c.l.b16 %v198
    %v238 = vunpack.c.l.b16 %v199
    %v239 = vunpack.c.l.b16 %v200
    %v240 = vunpack.c.l.b16 %v201
    %v241 = vunpack.c.l.b16 %v202
    %v242 = vunpack.c.l.b16 %v203
    %v243 = vunpack.c.l.b16 %v204
    %v244 = vpack.c.b16 %v229, %v228
    %v245 = vpack.c.b16 %v231, %v230
    %v246 = vpack.c.b16 %v233, %v232
    %v247 = vpack.c.b16 %v235, %v234
    %v248 = vpack.c.b16 %v237, %v236
    %v249 = vpack.c.b16 %v239, %v238
    %v250 = vpack.c.b16 %v241, %v240
    %v251 = vpack.c.b16 %v243, %v242
    %260 = vmatprep.subr.bf16.mxu0 0
    %261 = vmatpush1.bf16.msra.mxu0 %v251
    %262 = vmatprep.subr.bf16.mxu0 0
    %263 = vmatpush1.bf16.msra.mxu0 %v250
    %264 = vmatprep.subr.bf16.mxu0 0
    %265 = vmatpush1.bf16.msra.mxu0 %v249
    %266 = vmatprep.subr.bf16.mxu0 0
    %267 = vmatpush1.bf16.msra.mxu0 %v248
    %268 = vmatprep.subr.bf16.mxu0 0
    %269 = vmatpush1.bf16.msra.mxu0 %v247
    %270 = vmatprep.subr.bf16.mxu0 0
    %271 = vmatpush1.bf16.msra.mxu0 %v246
    %272 = vmatprep.subr.bf16.mxu0 0
    %273 = vmatpush1.bf16.msra.mxu0 %v245
    %274 = vmatprep.subr.bf16.mxu0 0
    %275 = vmatpush1.bf16.msra.mxu0 %v244
    %276 = vmatprep.subr.bf16.mxu0 0
    %277 = vmatpush2.bf16.msra.mxu0 0
    %278 = vmatprep.subr.bf16.mxu0 0
    %279 = vmatpush2.bf16.msra.mxu0 0
    %280 = vmatprep.subr.bf16.mxu0 0
    %281 = vmatpush2.bf16.msra.mxu0 0
    %282 = vmatprep.subr.bf16.mxu0 0
    %283 = vmatpush2.bf16.msra.mxu0 0
    %284 = vmatprep.subr.bf16.mxu0 0
    %285 = vmatpush2.bf16.msra.mxu0 0
    %286 = vmatprep.subr.bf16.mxu0 0
    %287 = vmatpush2.bf16.msra.mxu0 0
    %288 = vmatprep.subr.bf16.mxu0 0
    %289 = vmatpush2.bf16.msra.mxu0 0
    %290 = vmatprep.subr.bf16.mxu0 0
    %291 = vmatpush2.bf16.msra.mxu0 0
    %292 = vmatprep.mubr.bf16.mxu0 0
    %293 = vmatmul.mubr.bf16.gmra.mxu0 %v188
    %v294 = vpop.f32.mrf.mxu0
    %v295 = vadd.f32 %v210, %v294
    %v296 = vpop.f32.mrf.mxu0
    %v297 = vpop.f32.mrf.mxu0
    %v298 = vadd.f32 %v210, %v297
    %v299 = vpop.f32.mrf.mxu0
    %300 = vdwg.mxu0
    %301 = vst [vmem:[#allocation8] sm:$0xff] %v295
    %302 = vst [vmem:[#allocation8 + $0x8] sm:$0xff] %v298
    // Predicated region
    $region34: #{tpu_custom_call.1} parent=1 // pred_check
      _
    $region35: #{tpu_custom_call.1} parent=1 // pred_check_branch
      %304 = sbr.rel (0) target = $region37
    $region36: #{tpu_custom_call.1} parent=1 // pred_region
      %s306 = ssub.s32 256, 256
      %307 = vsyncadd [#allocation4], %s306
      %s308 = sshll.u32 [#allocation8], 4
      %s309 = int_to_ptr.vmem [resolvable:$true] %s308
      %314 = dma.vmem_to_hbm [thread:$0]  %s309, 256, %s5, [#allocation4], 128, 128, 8
    $region37: #{tpu_custom_call.1} parent=1 // pred_fallthru
      _
    // Predicated region
    $region38: #{tpu_custom_call.1} parent=1 // pred_check
      _
    $region39: #{tpu_custom_call.1} parent=1 // pred_check_branch
      %316 = sbr.rel (0) target = $region41
    $region40: #{tpu_custom_call.1} parent=1 // pred_region
      %317 = dma.done [#allocation4], 256
    $region41: #{tpu_custom_call.1} parent=1 // pred_fallthru
      _
    %318 = vsyncpa [#allocation3], 1
    %319 = vsyncpa [#allocation6], 1
    %320 = vsyncpa [#allocation4], 1

</llo_original>
